<compile_context>
chip_gen: v7x
topology: tpu7x:2x2x1
jax: 0.10.0
libtpu: 0.0.40
codegen_flags: <defaults>
</compile_context>

<pallas_src>
import jax
import jax.numpy as jnp
from jax.experimental import pallas as pl
from jax.experimental.pallas import tpu as pltpu

LANES = 128


def _pack_rows(x):
    """(N, D) float32 -> (N, ceil(D/128), 128), zero-padded along D."""
    n, d = x.shape
    pad = (-d) % LANES
    if pad:
        x = jnp.pad(x, ((0, 0), (0, pad)))
    r = (d + pad) // LANES
    return x.reshape(n, r, LANES), r


# ----------------------------------------------------------------------------
# Single baseline: exactly the module's forward(), output shape (1, 1).
# ----------------------------------------------------------------------------
def _baseline_kernel(param_ref, w_ref, b_ref, o_ref):
    # param_ref, w_ref: (R, 128) f32 in VMEM (one vreg for D=1024)
    # b_ref: (1, 1) f32 in SMEM; o_ref: (1, 1) f32 in VMEM
    prod = param_ref[...] * w_ref[...]             # one full-vreg VPU multiply
    s = jnp.sum(prod)                              # single intra-vreg XLU reduce
    # Identity activation (module default) — swap in the configured activation
    # here if a non-Identity one is used.
    o_ref[...] = (s + b_ref[0, 0]).reshape(1, 1)


def parametric_baseline(param, weight, bias):
    """param: (1, D), weight: (1, D), bias: (1, 1)  ->  (1, 1) float32."""
    p2, r = _pack_rows(param.astype(jnp.float32))
    w2, _ = _pack_rows(weight.astype(jnp.float32))
    p2 = p2.reshape(r, LANES)
    w2 = w2.reshape(r, LANES)
    return pl.pallas_call(
        _baseline_kernel,
        out_shape=jax.ShapeDtypeStruct((1, 1), jnp.float32),
        in_specs=[
            pl.BlockSpec((r, LANES), lambda: (0, 0)),
            pl.BlockSpec((r, LANES), lambda: (0, 0)),
            pl.BlockSpec(memory_space=pltpu.SMEM),     # bias via scalar path
        ],
        out_specs=pl.BlockSpec((1, 1), lambda: (0, 0)),
    )(p2, w2, bias.astype(jnp.float32))


# ----------------------------------------------------------------------------
# Batched variant: B independent baselines in one launch.
# ----------------------------------------------------------------------------
def _batched_baseline_kernel(param_ref, w_ref, b_ref, o_ref):
    # param_ref, w_ref: (1, R, 128) f32 VMEM block for row i
    # b_ref: full (B, 1) f32 in SMEM; o_ref: (1, 1) f32 VMEM block for row i
    i = pl.program_id(0)
    prod = param_ref[0] * w_ref[0]
    s = jnp.sum(prod)
    o_ref[...] = (s + b_ref[i, 0]).reshape(1, 1)


def parametric_baseline_batched(params, weights, biases):
    """params, weights: (B, D); biases: (B, 1)  ->  (B, 1) float32."""
    b, _ = params.shape
    p3, r = _pack_rows(params.astype(jnp.float32))
    w3, _ = _pack_rows(weights.astype(jnp.float32))
    return pl.pallas_call(
        _batched_baseline_kernel,
        out_shape=jax.ShapeDtypeStruct((b, 1), jnp.float32),
        grid=(b,),
        in_specs=[
            pl.BlockSpec((1, r, LANES), lambda i: (i, 0, 0)),
            pl.BlockSpec((1, r, LANES), lambda i: (i, 0, 0)),
            pl.BlockSpec(memory_space=pltpu.SMEM),     # full bias table in SMEM
        ],
        out_specs=pl.BlockSpec((1, 1), lambda i: (i, 0)),
        compiler_params=pltpu.CompilerParams(
            dimension_semantics=("parallel",)),
    )(p3, w3, biases.astype(jnp.float32))


if __name__ == "__main__":
    PARAM_DIM = 1024          # module default; packs to exactly one (8, 128) vreg
    BIAS_INIT = 0.0

    key = jax.random.PRNGKey(0)
    k_param, k_w = jax.random.split(key)

    # nn.Parameter(torch.randn(1, param_dim))
    param = jax.random.normal(k_param, (1, PARAM_DIM), dtype=jnp.float32)
    # init_selu(nn.Linear(param_dim, 1)) -> LeCun-normal weights, std = 1/sqrt(fan_in)
    weight = jax.random.normal(k_w, (1, PARAM_DIM), dtype=jnp.float32) / jnp.sqrt(
        jnp.float32(PARAM_DIM)
    )
    bias = jnp.full((1, 1), BIAS_INIT, dtype=jnp.float32)

    out = jax.block_until_ready(parametric_baseline(param, weight, bias))
    ref = param @ weight.T + bias
    assert out.shape == (1, 1)
    assert jnp.allclose(out, ref, atol=1e-5, rtol=1e-5)

    # Batched demo: 4 independent baselines fused into a single launch.
    B = 4
    kp, kw = jax.random.split(jax.random.PRNGKey(1))
    params = jax.random.normal(kp, (B, PARAM_DIM), dtype=jnp.float32)
    weights = jax.random.normal(kw, (B, PARAM_DIM), dtype=jnp.float32) / jnp.sqrt(
        jnp.float32(PARAM_DIM)
    )
    biases = jnp.full((B, 1), BIAS_INIT, dtype=jnp.float32)

    out_b = jax.block_until_ready(
        parametric_baseline_batched(params, weights, biases))
    ref_b = jnp.sum(params * weights, axis=1, keepdims=True) + biases
    assert out_b.shape == (B, 1)
    assert jnp.allclose(out_b, ref_b, atol=1e-5, rtol=1e-5)

    print("KERNEL_OK")
</pallas_src>

<mosaic_0001>
module attributes {stable_mosaic.version = 11 : i64} {
  func.func @_baseline_kernel(%arg0: memref<8x128xf32, #tpu.memory_space<vmem>>, %arg1: memref<8x128xf32, #tpu.memory_space<vmem>>, %arg2: memref<1x1xf32, #tpu.memory_space<smem>>, %arg3: memref<1x1xf32, #tpu.memory_space<vmem>>) attributes {dimension_semantics = [], scalar_prefetch = 0 : i64, scratch_operands = 0 : i64, tpu.core_type = #tpu.core_type<tc>} {
    %c0 = arith.constant 0 : index
    %c0_0 = arith.constant 0 : index
    %0 = vector.load %arg0[%c0, %c0_0] : memref<8x128xf32, #tpu.memory_space<vmem>>, vector<8x128xf32>
    %c0_1 = arith.constant 0 : index
    %c0_2 = arith.constant 0 : index
    %1 = vector.load %arg1[%c0_1, %c0_2] : memref<8x128xf32, #tpu.memory_space<vmem>>, vector<8x128xf32>
    %2 = arith.mulf %0, %1 : vector<8x128xf32>
    %3 = vector.shape_cast %2 : vector<8x128xf32> to vector<1x8x128xf32>
    %cst = arith.constant dense<0.000000e+00> : vector<1xf32>
    %4 = vector.multi_reduction <add>, %3, %cst [1, 2] : vector<1x8x128xf32> to vector<1xf32>
    %5 = vector.shape_cast %4 : vector<1xf32> to vector<1x1x1xf32>
    %6 = vector.extract %5[0, 0, 0] : f32 from vector<1x1x1xf32>
    %c0_3 = arith.constant 0 : index
    %c0_4 = arith.constant 0 : index
    %7 = memref.load %arg2[%c0_3, %c0_4] : memref<1x1xf32, #tpu.memory_space<smem>>
    %8 = arith.addf %6, %7 : f32
    %9 = vector.broadcast %8 : f32 to vector<1x1xf32>
    %c0_5 = arith.constant 0 : index
    %c0_6 = arith.constant 0 : index
    %10 = vector.load %arg3[%c0_5, %c0_6] : memref<1x1xf32, #tpu.memory_space<vmem>>, vector<1x1xf32>
    tpu.vector_store %arg3[%c0_5, %c0_6], %9 {strides = array<i32>} : memref<1x1xf32, #tpu.memory_space<vmem>>, vector<1x1xf32>,
    return
  }
}

</mosaic_0001>

<llo_original>
// kernel: tpu_custom_call.1
$region0: #{tpu_custom_call.1}
  #allocation0 [shape = 'u32[]', space=smem, size = 0x4, offset = 0x4, fixed_abs, tag = 'smem constant byte address 0x4 - core index']
  #allocation1 [shape = 'u32[144,128]{1,0:T(1,128)}', space=vmem, size = 0x12000, scoped, tag = 'internal scratch']
  #allocation2 [shape = 'f32[1,1]{1,0:T(1,128)S(6)}', space=smem, size = 0x200, scoped, tag = 'scoped memory for tpu_custom_call.1']
  %s0 = inlined_call_operand.hbm [shape: f32[8,128], index: 0, kind: input, shape index: {}]
  %s1 = inlined_call_operand.hbm [shape: f32[8,128], index: 1, kind: input, shape index: {}]
  %s2 = inlined_call_operand.<no memory space> [shape: f32[1,1], index: 2, kind: input, shape index: {}]
  %s3 = inlined_call_operand.hbm [shape: f32[1,1], index: 3, kind: output, shape index: {}]
  %s4 = sld [smem:[#allocation0]]
  $region30: #{tpu_custom_call.1} parent=0
    _
  %s6 = ssub.s32 1, %s4
  %s7 = scalar_select 0, %s6, %s4
  %8 = sst [smem:[#allocation2]] %s2
  $region1: #{tpu_custom_call.1} parent=0
    #allocation3 [shape = 'u8[4096]{0}', space=vmem, size = 0x1000, scoped, tag = 'input window, operand 0, single buffered']
    #allocation4 [shape = 's32[1]{0}', space=sflag, size = 0x4, scoped, tag = 'scoped memory for tpu_custom_call.1']
    #allocation5 [shape = 's32[1]{0}', space=sflag, size = 0x4, scoped, tag = 'scoped memory for tpu_custom_call.1']
    #allocation6 [shape = 'u8[4096]{0}', space=vmem, size = 0x1000, scoped, tag = 'input window, operand 1, single buffered']
    #allocation7 [shape = 's32[1]{0}', space=sflag, size = 0x4, scoped, tag = 'scoped memory for tpu_custom_call.1']
    #allocation8 [shape = 'u8[512]{0}', space=vmem, size = 0x400, scoped, tag = 'output window, operand 0, single buffered']
    %9 = vsyncpa [#allocation4], 0
    %10 = vsyncpa [#allocation7], 0
    %11 = vsyncpa [#allocation5], 0
    // Predicated region
    $region2: #{tpu_custom_call.1} parent=1 // pred_check
      _
    $region3: #{tpu_custom_call.1} parent=1 // pred_check_branch
      %13 = sbr.rel (0) target = $region5
    $region4: #{tpu_custom_call.1} parent=1 // pred_region
      %s15 = ssub.s32 128, 128
      %16 = vsyncadd [#allocation4], %s15
      %s18 = sshll.u32 [#allocation3], 4
      %s19 = int_to_ptr.vmem [resolvable:$true] %s18
      %21 = dma.hbm_to_vmem [thread:$0]  %s0, 128, %s19, [#allocation4]
    $region5: #{tpu_custom_call.1} parent=1 // pred_fallthru
      _
    // Predicated region
    $region6: #{tpu_custom_call.1} parent=1 // pred_check
      _
    $region7: #{tpu_custom_call.1} parent=1 // pred_check_branch
      %23 = sbr.rel (0) target = $region9
    $region8: #{tpu_custom_call.1} parent=1 // pred_region
      %s25 = ssub.s32 128, 128
      %26 = vsyncadd [#allocation7], %s25
      %s28 = sshll.u32 [#allocation6], 4
      %s29 = int_to_ptr.vmem [resolvable:$true] %s28
      %31 = dma.hbm_to_vmem [thread:$0]  %s1, 128, %s29, [#allocation7]
    $region9: #{tpu_custom_call.1} parent=1 // pred_fallthru
      _
    // Predicated region
    $region10: #{tpu_custom_call.1} parent=1 // pred_check
      _
    $region11: #{tpu_custom_call.1} parent=1 // pred_check_branch
      %33 = sbr.rel (0) target = $region13
    $region12: #{tpu_custom_call.1} parent=1 // pred_region
      _
    $region13: #{tpu_custom_call.1} parent=1 // pred_fallthru
      _
    // Predicated region
    $region14: #{tpu_custom_call.1} parent=1 // pred_check
      _
    $region15: #{tpu_custom_call.1} parent=1 // pred_check_branch
      %35 = sbr.rel (0) target = $region17
    $region16: #{tpu_custom_call.1} parent=1 // pred_region
      %36 = dma.done [#allocation4], 128
    $region17: #{tpu_custom_call.1} parent=1 // pred_fallthru
      _
    // Predicated region
    $region18: #{tpu_custom_call.1} parent=1 // pred_check
      _
    $region19: #{tpu_custom_call.1} parent=1 // pred_check_branch
      %38 = sbr.rel (0) target = $region21
    $region20: #{tpu_custom_call.1} parent=1 // pred_region
      %39 = dma.done [#allocation7], 128
    $region21: #{tpu_custom_call.1} parent=1 // pred_fallthru
      _
    %v40 = vld [vmem:[#allocation3] sm:$0xff]
    %v41 = vld [vmem:[#allocation6] sm:$0xff]
    %v42 = vmul.f32 %v40, %v41
    %43 = vadd.xlane.f32.xlu0 %v42
    %v44 = vpop.xlane.xlu0 %43
    %v45 = vrot.slane %v44, 4
    %v46 = vadd.f32 %v44, %v45
    %v47 = vrot.slane %v46, 2
    %v48 = vadd.f32 %v46, %v47
    %v49 = vrot.slane %v48, 1
    %v50 = vadd.f32 %v48, %v49
    %s51 = vtos %v50
    %s52 = sld [smem:[#allocation2]]
    %s53 = sadd.f32 %s51, %s52
    %v54 = vstv %s53
    %vm55 = vcmask 0
    %56 = vst.msk [vmem:[#allocation8] sm:$0x1] %vm55, %v54
    // Predicated region
    $region22: #{tpu_custom_call.1} parent=1 // pred_check
      _
    $region23: #{tpu_custom_call.1} parent=1 // pred_check_branch
      %58 = sbr.rel (0) target = $region25
    $region24: #{tpu_custom_call.1} parent=1 // pred_region
      %s60 = ssub.s32 16, 16
      %61 = vsyncadd [#allocation5], %s60
      %s63 = sshll.u32 [#allocation8], 4
      %s64 = int_to_ptr.vmem [resolvable:$true] %s63
      %66 = dma.vmem_to_hbm [thread:$0]  %s64, 16, %s3, [#allocation5]
    $region25: #{tpu_custom_call.1} parent=1 // pred_fallthru
      _
    // Predicated region
    $region26: #{tpu_custom_call.1} parent=1 // pred_check
      _
    $region27: #{tpu_custom_call.1} parent=1 // pred_check_branch
      %68 = sbr.rel (0) target = $region29
    $region28: #{tpu_custom_call.1} parent=1 // pred_region
      %69 = dma.done [#allocation5], 16
    $region29: #{tpu_custom_call.1} parent=1 // pred_fallthru
      _
    %70 = vsyncpa [#allocation4], 1
    %71 = vsyncpa [#allocation7], 1
    %72 = vsyncpa [#allocation5], 1

</llo_original>
